<compile_context>
chip_gen: v5e
topology: v5e:2x2
jax: 0.10.0
libtpu: 0.0.40
codegen_flags: <defaults>
</compile_context>

<pallas_src>
import functools

import jax
import jax.numpy as jnp
from jax.experimental import pallas as pl
from jax.experimental.pallas import tpu as pltpu

EPS = 1e-5
_KP = 8  # fc1 contraction dim, zero-padded from input_dim(=3) to a full sublane


def _dvl_kernel(x_ref, p1_ref, p2_ref, o_ref,
                stat1_ref, stat2_ref, piv1_ref, piv2_ref,
                *, batch, tile, kp, in_dim):
    # p1 rows: [0:kp) = W1 (rows in_dim..kp-1 are zero), kp = b1, kp+1 = g1, kp+2 = be1
    # p2 rows: [0:H)  = W2, H = b2, H+1 = g2, H+2 = be2
    p = pl.program_id(0)            # phase: 0 = BN1 stats, 1 = BN2 stats, 2 = write
    t = pl.program_id(1)            # batch tile index
    H = p1_ref.shape[1]
    TB = x_ref.shape[0]
    inv_b = 1.0 / batch

    # Valid-row mask for a ragged last tile (static no-op when batch % tile == 0).
    if batch % tile != 0:
        rows = t * tile + jax.lax.broadcasted_iota(jnp.int32, (TB, 1), 0)
        valid = rows < batch
    else:
        valid = None

    def mask(v):
        return v if valid is None else jnp.where(valid, v, 0.0)

    x = x_ref[...].astype(jnp.float32)                               # [TB, in_dim]
    if kp > in_dim:                                                  # K: 3 -> 8
        x = jnp.concatenate(
            [x, jnp.zeros((TB, kp - in_dim), jnp.float32)], axis=1)  # [TB, kp]

    def fc1():                                                       # MXU, K = 8
        h = jnp.dot(x, p1_ref[0:kp, :], preferred_element_type=jnp.float32)
        return h + p1_ref[kp:kp + 1, :]

    def bn_coeffs(stat_ref, piv_ref, gamma, beta):
        m_shift = stat_ref[0:1, :] * inv_b                           # mean - pivot
        var = jnp.maximum(stat_ref[1:2, :] * inv_b - m_shift * m_shift, 0.0)
        scale = gamma * jax.lax.rsqrt(var + EPS)                     # EUP
        shift = beta - (piv_ref[...] + m_shift) * scale
        return scale, shift

    def stage1():                                                    # BN1 + ReLU
        s1, sh1 = bn_coeffs(stat1_ref, piv1_ref,
                            p1_ref[kp + 1:kp + 2, :], p1_ref[kp + 2:kp + 3, :])
        return jnp.maximum(fc1() * s1 + sh1, 0.0)

    def fc2(h):                                                      # MXU, 32x64
        z = jnp.dot(h, p2_ref[0:H, :], preferred_element_type=jnp.float32)
        return z + p2_ref[H:H + 1, :]

    @pl.when((p == 0) & (t == 0))
    def _():
        stat1_ref[...] = jnp.zeros_like(stat1_ref)
        stat2_ref[...] = jnp.zeros_like(stat2_ref)

    @pl.when(p == 0)
    def _():
        h = fc1()

        @pl.when(t == 0)
        def _():
            piv1_ref[...] = h[0:1, :]

        d = mask(h - piv1_ref[...])
        stat1_ref[0:1, :] += jnp.sum(d, axis=0, keepdims=True)
        stat1_ref[1:2, :] += jnp.sum(d * d, axis=0, keepdims=True)

    @pl.when(p == 1)
    def _():
        z = fc2(stage1())

        @pl.when(t == 0)
        def _():
            piv2_ref[...] = z[0:1, :]

        d = mask(z - piv2_ref[...])
        stat2_ref[0:1, :] += jnp.sum(d, axis=0, keepdims=True)
        stat2_ref[1:2, :] += jnp.sum(d * d, axis=0, keepdims=True)

    @pl.when(p == 2)
    def _():
        z = fc2(stage1())
        s2, sh2 = bn_coeffs(stat2_ref, piv2_ref,
                            p2_ref[H + 1:H + 2, :], p2_ref[H + 2:H + 3, :])
        o_ref[...] = jnp.maximum(z * s2 + sh2, 0.0).astype(o_ref.dtype)


def pack_dvl_params(params, kp=_KP):
    """Pack the 8 DVLEncoder parameter arrays into two tensors. Call ONCE at init."""
    w1, b1, g1, be1, w2, b2, g2, be2 = params
    in_dim, hidden = w1.shape
    kpad = jnp.zeros((kp - in_dim, hidden), jnp.float32)
    p1 = jnp.concatenate([w1, kpad, b1, g1, be1], axis=0).astype(jnp.float32)  # [kp+3, H]
    p2 = jnp.concatenate([w2, b2, g2, be2], axis=0).astype(jnp.float32)        # [H+3, N]
    return p1, p2


def _round_up(n, m):
    return -(-n // m) * m


def dvl_encoder(x, p1, p2, *, tile=None):
    """x: [B, input_dim] (any float dtype) -> [B, output_dim] float32."""
    B, in_dim = x.shape
    kp = p1.shape[0] - 3
    H = p1.shape[1]
    N = p2.shape[1]

    # Batch tile: single block for small B, else a multiple of 8 (sublane rule).
    if tile is None:
        tile = B if B <= 1024 else 1024
    tile = min(tile, B)
    if tile != B:
        tile = max(8, (tile // 8) * 8)
    num_tiles = -(-B // tile)

    # VMEM budget from actual (sublane/lane-padded) tile bytes, 2x margin.
    def tile_bytes(r, c):
        return _round_up(r, 8) * _round_up(c, 128) * 4

    vmem_limit = int(min(
        64 * 1024 * 1024,
        max(4 * 1024 * 1024,
            2 * (2 * tile_bytes(tile, in_dim)                     # x (double-buffered)
                 + 2 * tile_bytes(tile, N)                        # out (double-buffered)
                 + tile_bytes(kp + 3, H) + tile_bytes(H + 3, N)   # packed params
                 + 4 * tile_bytes(tile, 128)))))                  # h/z temporaries headroom

    kernel = functools.partial(_dvl_kernel, batch=B, tile=tile, kp=kp, in_dim=in_dim)

    grid_spec = pltpu.PrefetchScalarGridSpec(
        num_scalar_prefetch=0,
        grid=(3, num_tiles),                                       # (phase, batch tile)
        in_specs=[
            pl.BlockSpec((tile, in_dim), lambda p, t: (t, 0)),
            pl.BlockSpec((kp + 3, H), lambda p, t: (0, 0)),
            pl.BlockSpec((H + 3, N), lambda p, t: (0, 0)),
        ],
        # Output block only advances during phase 2 -> no garbage writebacks in
        # the two statistics phases and each tile is written back exactly once.
        out_specs=pl.BlockSpec((tile, N), lambda p, t: (jnp.where(p == 2, t, 0), 0)),
        scratch_shapes=[
            pltpu.VMEM((2, H), jnp.float32),   # BN1 [sum; sum-sq] (pivot-shifted)
            pltpu.VMEM((2, N), jnp.float32),   # BN2 [sum; sum-sq]
            pltpu.VMEM((1, H), jnp.float32),   # BN1 pivot (first row of h)
            pltpu.VMEM((1, N), jnp.float32),   # BN2 pivot (first row of z)
        ],
    )

    return pl.pallas_call(
        kernel,
        out_shape=jax.ShapeDtypeStruct((B, N), jnp.float32),
        grid_spec=grid_spec,
        compiler_params=pltpu.CompilerParams(
            # Stats accumulate sequentially across tiles -> both axes arbitrary.
            dimension_semantics=("arbitrary", "arbitrary"),
            vmem_limit_bytes=vmem_limit,
        ),
    )(x, p1, p2)


def init_params(key, input_dim=3, hidden=32, output_dim=64):
    k1, k2, k3, k4 = jax.random.split(key, 4)
    # Weights stored as [in_features, out_features] so the matmul is x @ W.
    w1 = jax.random.normal(k1, (input_dim, hidden), jnp.float32) * 0.5
    b1 = jax.random.normal(k2, (1, hidden), jnp.float32) * 0.1
    g1 = jnp.ones((1, hidden), jnp.float32)        # bn1.weight
    be1 = jnp.zeros((1, hidden), jnp.float32)      # bn1.bias
    w2 = jax.random.normal(k3, (hidden, output_dim), jnp.float32) * 0.2
    b2 = jax.random.normal(k4, (1, output_dim), jnp.float32) * 0.1
    g2 = jnp.ones((1, output_dim), jnp.float32)    # bn2.weight
    be2 = jnp.zeros((1, output_dim), jnp.float32)  # bn2.bias
    return (w1, b1, g1, be1, w2, b2, g2, be2)


def reference(x, params):
    """Pure-JAX reference of the PyTorch forward (training-mode BN)."""
    w1, b1, g1, be1, w2, b2, g2, be2 = params
    h = x @ w1 + b1
    m, v = jnp.mean(h, 0, keepdims=True), jnp.var(h, 0, keepdims=True)
    h = jnp.maximum(g1 * (h - m) / jnp.sqrt(v + EPS) + be1, 0.0)
    z = h @ w2 + b2
    m, v = jnp.mean(z, 0, keepdims=True), jnp.var(z, 0, keepdims=True)
    return jnp.maximum(g2 * (z - m) / jnp.sqrt(v + EPS) + be2, 0.0)


if __name__ == "__main__":
    key = jax.random.PRNGKey(0)
    kx, kx2, kparam = jax.random.split(key, 3)

    B, INPUT_DIM, OUTPUT_DIM = 8, 3, 64
    x = jax.random.normal(kx, (B, INPUT_DIM), jnp.float32)
    params = init_params(kparam, input_dim=INPUT_DIM, hidden=32, output_dim=OUTPUT_DIM)
    p1, p2 = pack_dvl_params(params)   # packed once, reused for every forward call

    fwd = jax.jit(dvl_encoder, static_argnames=("tile",))

    out = jax.block_until_ready(fwd(x, p1, p2))
    ref = reference(x, params)
    assert out.shape == (B, OUTPUT_DIM), out.shape
    assert jnp.allclose(out, ref, atol=1e-4, rtol=1e-4), "mismatch vs reference"

    # Also exercise the multi-tile (3-phase, accumulated-stats) path.
    x_big = jax.random.normal(kx2, (24, INPUT_DIM), jnp.float32)
    out_big = jax.block_until_ready(fwd(x_big, p1, p2, tile=8))
    ref_big = reference(x_big, params)
    assert out_big.shape == (24, OUTPUT_DIM), out_big.shape
    assert jnp.allclose(out_big, ref_big, atol=1e-4, rtol=1e-4), "multi-tile mismatch"

    print("KERNEL_OK")
</pallas_src>

<mosaic_0001>
module attributes {stable_mosaic.version = 11 : i64} {
  func.func @_dvl_kernel(%arg0: i32, %arg1: i32, %arg2: memref<8x3xf32, #tpu.memory_space<vmem>>, %arg3: memref<11x32xf32, #tpu.memory_space<vmem>>, %arg4: memref<35x64xf32, #tpu.memory_space<vmem>>, %arg5: memref<8x64xf32, #tpu.memory_space<vmem>>, %arg6: memref<2x32xf32, #tpu.memory_space<vmem>>, %arg7: memref<2x64xf32, #tpu.memory_space<vmem>>, %arg8: memref<1x32xf32, #tpu.memory_space<vmem>>, %arg9: memref<1x64xf32, #tpu.memory_space<vmem>>) attributes {dimension_semantics = [#tpu.dimension_semantics<arbitrary>, #tpu.dimension_semantics<arbitrary>], iteration_bounds = array<i64: 3, 1>, scalar_prefetch = 0 : i64, scratch_operands = 4 : i64, tpu.core_type = #tpu.core_type<tc>, window_params = [{transform_indices = @transform_0, window_bounds = array<i64: 8, 3>}, {pipeline_mode = #tpu.pipeline_mode<synchronous>, transform_indices = @transform_1, window_bounds = array<i64: 11, 32>}, {pipeline_mode = #tpu.pipeline_mode<synchronous>, transform_indices = @transform_2, window_bounds = array<i64: 35, 64>}, {transform_indices = @transform_3, window_bounds = array<i64: 8, 64>}]} {
    %c0 = arith.constant 0 : index
    %c0_0 = arith.constant 0 : index
    %0 = vector.load %arg2[%c0, %c0_0] : memref<8x3xf32, #tpu.memory_space<vmem>>, vector<8x3xf32>
    %cst = arith.constant 0.000000e+00 : f32
    %1 = vector.broadcast %cst : f32 to vector<8x5xf32>
    %2 = tpu.concatenate %0, %1 in 1 : vector<8x3xf32>, vector<8x5xf32> -> vector<8x8xf32>
    %c0_i32 = arith.constant 0 : i32
    %3 = arith.cmpi eq, %arg0, %c0_i32 : i32
    %c0_i32_1 = arith.constant 0 : i32
    %4 = arith.cmpi eq, %arg1, %c0_i32_1 : i32
    %5 = arith.andi %3, %4 : i1
    %6 = arith.extui %5 : i1 to i32
    %c0_i32_2 = arith.constant 0 : i32
    %7 = arith.cmpi ne, %6, %c0_i32_2 : i32
    scf.if %7 {
      %cst_7 = arith.constant 0.000000e+00 : f32
      %17 = vector.broadcast %cst_7 : f32 to vector<2x32xf32>
      %c0_8 = arith.constant 0 : index
      %c0_9 = arith.constant 0 : index
      %18 = vector.load %arg6[%c0_8, %c0_9] : memref<2x32xf32, #tpu.memory_space<vmem>>, vector<2x32xf32>
      tpu.vector_store %arg6[%c0_8, %c0_9], %17 {strides = array<i32>} : memref<2x32xf32, #tpu.memory_space<vmem>>, vector<2x32xf32>,
      %cst_10 = arith.constant 0.000000e+00 : f32
      %19 = vector.broadcast %cst_10 : f32 to vector<2x64xf32>
      %c0_11 = arith.constant 0 : index
      %c0_12 = arith.constant 0 : index
      %20 = vector.load %arg7[%c0_11, %c0_12] : memref<2x64xf32, #tpu.memory_space<vmem>>, vector<2x64xf32>
      tpu.vector_store %arg7[%c0_11, %c0_12], %19 {strides = array<i32>} : memref<2x64xf32, #tpu.memory_space<vmem>>, vector<2x64xf32>,
    } else {
    }
    %c0_i32_3 = arith.constant 0 : i32
    %8 = arith.cmpi eq, %arg0, %c0_i32_3 : i32
    %9 = arith.extui %8 : i1 to i32
    %c0_i32_4 = arith.constant 0 : i32
    %10 = arith.cmpi ne, %9, %c0_i32_4 : i32
    scf.if %10 {
      %c0_7 = arith.constant 0 : index
      %c0_8 = arith.constant 0 : index
      %17 = vector.load %arg3[%c0_7, %c0_8] : memref<11x32xf32, #tpu.memory_space<vmem>>, vector<8x32xf32>
      %cst_9 = arith.constant dense<0.000000e+00> : vector<8x32xf32>
      %18 = tpu.matmul %2, %17, %cst_9 {dimension_numbers = #tpu.dot_dimension_numbers<[1], [0], [0], [1], [0, 0, 1, 1], [], []>} : vector<8x8xf32>, vector<8x32xf32>, vector<8x32xf32> -> vector<8x32xf32>
      %c8 = arith.constant 8 : index
      %c0_10 = arith.constant 0 : index
      %19 = vector.load %arg3[%c8, %c0_10] : memref<11x32xf32, #tpu.memory_space<vmem>>, vector<1x32xf32>
      %20 = vector.broadcast %19 : vector<1x32xf32> to vector<8x32xf32>
      %21 = arith.addf %18, %20 : vector<8x32xf32>
      %c0_i32_11 = arith.constant 0 : i32
      %22 = arith.cmpi eq, %arg1, %c0_i32_11 : i32
      %23 = arith.extui %22 : i1 to i32
      %c0_i32_12 = arith.constant 0 : i32
      %24 = arith.cmpi ne, %23, %c0_i32_12 : i32
      scf.if %24 {
        %39 = vector.extract_strided_slice %21 {offsets = [0, 0], sizes = [1, 32], strides = [1, 1]} : vector<8x32xf32> to vector<1x32xf32>
        %c0_24 = arith.constant 0 : index
        %c0_25 = arith.constant 0 : index
        %40 = vector.load %arg8[%c0_24, %c0_25] : memref<1x32xf32, #tpu.memory_space<vmem>>, vector<1x32xf32>
        tpu.vector_store %arg8[%c0_24, %c0_25], %39 {strides = array<i32>} : memref<1x32xf32, #tpu.memory_space<vmem>>, vector<1x32xf32>,
      } else {
      }
      %c0_13 = arith.constant 0 : index
      %c0_14 = arith.constant 0 : index
      %25 = vector.load %arg8[%c0_13, %c0_14] : memref<1x32xf32, #tpu.memory_space<vmem>>, vector<1x32xf32>
      %26 = vector.broadcast %25 : vector<1x32xf32> to vector<8x32xf32>
      %27 = arith.subf %21, %26 : vector<8x32xf32>
      %c0_15 = arith.constant 0 : index
      %c0_16 = arith.constant 0 : index
      %28 = vector.load %arg6[%c0_15, %c0_16] : memref<2x32xf32, #tpu.memory_space<vmem>>, vector<1x32xf32>
      %cst_17 = arith.constant dense<0.000000e+00> : vector<32xf32>
      %29 = vector.multi_reduction <add>, %27, %cst_17 [0] : vector<8x32xf32> to vector<32xf32>
      %30 = vector.shape_cast %29 : vector<32xf32> to vector<1x32xf32>
      %31 = arith.addf %28, %30 : vector<1x32xf32>
      %c0_18 = arith.constant 0 : index
      %c0_19 = arith.constant 0 : index
      %32 = vector.load %arg6[%c0_18, %c0_19] : memref<2x32xf32, #tpu.memory_space<vmem>>, vector<1x32xf32>
      tpu.vector_store %arg6[%c0_18, %c0_19], %31 {strides = array<i32>} : memref<2x32xf32, #tpu.memory_space<vmem>>, vector<1x32xf32>,
      %c1 = arith.constant 1 : index
      %c0_20 = arith.constant 0 : index
      %33 = vector.load %arg6[%c1, %c0_20] : memref<2x32xf32, #tpu.memory_space<vmem>>, vector<1x32xf32>
      %34 = arith.mulf %27, %27 : vector<8x32xf32>
      %cst_21 = arith.constant dense<0.000000e+00> : vector<32xf32>
      %35 = vector.multi_reduction <add>, %34, %cst_21 [0] : vector<8x32xf32> to vector<32xf32>
      %36 = vector.shape_cast %35 : vector<32xf32> to vector<1x32xf32>
      %37 = arith.addf %33, %36 : vector<1x32xf32>
      %c1_22 = arith.constant 1 : index
      %c0_23 = arith.constant 0 : index
      %38 = vector.load %arg6[%c1_22, %c0_23] : memref<2x32xf32, #tpu.memory_space<vmem>>, vector<1x32xf32>
      tpu.vector_store %arg6[%c1_22, %c0_23], %37 {strides = array<i32>} : memref<2x32xf32, #tpu.memory_space<vmem>>, vector<1x32xf32>,
    } else {
    }
    %c1_i32 = arith.constant 1 : i32
    %11 = arith.cmpi eq, %arg0, %c1_i32 : i32
    %12 = arith.extui %11 : i1 to i32
    %c0_i32_5 = arith.constant 0 : i32
    %13 = arith.cmpi ne, %12, %c0_i32_5 : i32
    scf.if %13 {
      %c9 = arith.constant 9 : index
      %c0_7 = arith.constant 0 : index
      %17 = vector.load %arg3[%c9, %c0_7] : memref<11x32xf32, #tpu.memory_space<vmem>>, vector<1x32xf32>
      %c10 = arith.constant 10 : index
      %c0_8 = arith.constant 0 : index
      %18 = vector.load %arg3[%c10, %c0_8] : memref<11x32xf32, #tpu.memory_space<vmem>>, vector<1x32xf32>
      %c0_9 = arith.constant 0 : index
      %c0_10 = arith.constant 0 : index
      %19 = vector.load %arg6[%c0_9, %c0_10] : memref<2x32xf32, #tpu.memory_space<vmem>>, vector<1x32xf32>
      %cst_11 = arith.constant 1.250000e-01 : f32
      %20 = vector.broadcast %cst_11 : f32 to vector<1x32xf32>
      %21 = arith.mulf %19, %20 : vector<1x32xf32>
      %c1 = arith.constant 1 : index
      %c0_12 = arith.constant 0 : index
      %22 = vector.load %arg6[%c1, %c0_12] : memref<2x32xf32, #tpu.memory_space<vmem>>, vector<1x32xf32>
      %cst_13 = arith.constant 1.250000e-01 : f32
      %23 = vector.broadcast %cst_13 : f32 to vector<1x32xf32>
      %24 = arith.mulf %22, %23 : vector<1x32xf32>
      %25 = arith.mulf %21, %21 : vector<1x32xf32>
      %26 = arith.subf %24, %25 : vector<1x32xf32>
      %cst_14 = arith.constant 0.000000e+00 : f32
      %27 = vector.broadcast %cst_14 : f32 to vector<1x32xf32>
      %28 = arith.maximumf %26, %27 : vector<1x32xf32>
      %cst_15 = arith.constant 9.99999974E-6 : f32
      %29 = vector.broadcast %cst_15 : f32 to vector<1x32xf32>
      %30 = arith.addf %28, %29 : vector<1x32xf32>
      %31 = math.rsqrt %30 : vector<1x32xf32>
      %32 = arith.mulf %17, %31 : vector<1x32xf32>
      %c0_16 = arith.constant 0 : index
      %c0_17 = arith.constant 0 : index
      %33 = vector.load %arg8[%c0_16, %c0_17] : memref<1x32xf32, #tpu.memory_space<vmem>>, vector<1x32xf32>
      %34 = arith.addf %33, %21 : vector<1x32xf32>
      %35 = arith.mulf %34, %32 : vector<1x32xf32>
      %36 = arith.subf %18, %35 : vector<1x32xf32>
      %c0_18 = arith.constant 0 : index
      %c0_19 = arith.constant 0 : index
      %37 = vector.load %arg3[%c0_18, %c0_19] : memref<11x32xf32, #tpu.memory_space<vmem>>, vector<8x32xf32>
      %cst_20 = arith.constant dense<0.000000e+00> : vector<8x32xf32>
      %38 = tpu.matmul %2, %37, %cst_20 {dimension_numbers = #tpu.dot_dimension_numbers<[1], [0], [0], [1], [0, 0, 1, 1], [], []>} : vector<8x8xf32>, vector<8x32xf32>, vector<8x32xf32> -> vector<8x32xf32>
      %c8 = arith.constant 8 : index
      %c0_21 = arith.constant 0 : index
      %39 = vector.load %arg3[%c8, %c0_21] : memref<11x32xf32, #tpu.memory_space<vmem>>, vector<1x32xf32>
      %40 = vector.broadcast %39 : vector<1x32xf32> to vector<8x32xf32>
      %41 = arith.addf %38, %40 : vector<8x32xf32>
      %42 = vector.broadcast %32 : vector<1x32xf32> to vector<8x32xf32>
      %43 = arith.mulf %41, %42 : vector<8x32xf32>
      %44 = vector.broadcast %36 : vector<1x32xf32> to vector<8x32xf32>
      %45 = arith.addf %43, %44 : vector<8x32xf32>
      %cst_22 = arith.constant 0.000000e+00 : f32
      %46 = vector.broadcast %cst_22 : f32 to vector<8x32xf32>
      %47 = arith.maximumf %45, %46 : vector<8x32xf32>
      %c0_23 = arith.constant 0 : index
      %c0_24 = arith.constant 0 : index
      %48 = vector.load %arg4[%c0_23, %c0_24] : memref<35x64xf32, #tpu.memory_space<vmem>>, vector<32x64xf32>
      %cst_25 = arith.constant dense<0.000000e+00> : vector<8x64xf32>
      %49 = tpu.matmul %47, %48, %cst_25 {dimension_numbers = #tpu.dot_dimension_numbers<[1], [0], [0], [1], [0, 0, 1, 1], [], []>} : vector<8x32xf32>, vector<32x64xf32>, vector<8x64xf32> -> vector<8x64xf32>
      %c32 = arith.constant 32 : index
      %c0_26 = arith.constant 0 : index
      %50 = vector.load %arg4[%c32, %c0_26] : memref<35x64xf32, #tpu.memory_space<vmem>>, vector<1x64xf32>
      %51 = vector.broadcast %50 : vector<1x64xf32> to vector<8x64xf32>
      %52 = arith.addf %49, %51 : vector<8x64xf32>
      %c0_i32_27 = arith.constant 0 : i32
      %53 = arith.cmpi eq, %arg1, %c0_i32_27 : i32
      %54 = arith.extui %53 : i1 to i32
      %c0_i32_28 = arith.constant 0 : i32
      %55 = arith.cmpi ne, %54, %c0_i32_28 : i32
      scf.if %55 {
        %70 = vector.extract_strided_slice %52 {offsets = [0, 0], sizes = [1, 64], strides = [1, 1]} : vector<8x64xf32> to vector<1x64xf32>
        %c0_41 = arith.constant 0 : index
        %c0_42 = arith.constant 0 : index
        %71 = vector.load %arg9[%c0_41, %c0_42] : memref<1x64xf32, #tpu.memory_space<vmem>>, vector<1x64xf32>
        tpu.vector_store %arg9[%c0_41, %c0_42], %70 {strides = array<i32>} : memref<1x64xf32, #tpu.memory_space<vmem>>, vector<1x64xf32>,
      } else {
      }
      %c0_29 = arith.constant 0 : index
      %c0_30 = arith.constant 0 : index
      %56 = vector.load %arg9[%c0_29, %c0_30] : memref<1x64xf32, #tpu.memory_space<vmem>>, vector<1x64xf32>
      %57 = vector.broadcast %56 : vector<1x64xf32> to vector<8x64xf32>
      %58 = arith.subf %52, %57 : vector<8x64xf32>
      %c0_31 = arith.constant 0 : index
      %c0_32 = arith.constant 0 : index
      %59 = vector.load %arg7[%c0_31, %c0_32] : memref<2x64xf32, #tpu.memory_space<vmem>>, vector<1x64xf32>
      %cst_33 = arith.constant dense<0.000000e+00> : vector<64xf32>
      %60 = vector.multi_reduction <add>, %58, %cst_33 [0] : vector<8x64xf32> to vector<64xf32>
      %61 = vector.shape_cast %60 : vector<64xf32> to vector<1x64xf32>
      %62 = arith.addf %59, %61 : vector<1x64xf32>
      %c0_34 = arith.constant 0 : index
      %c0_35 = arith.constant 0 : index
      %63 = vector.load %arg7[%c0_34, %c0_35] : memref<2x64xf32, #tpu.memory_space<vmem>>, vector<1x64xf32>
      tpu.vector_store %arg7[%c0_34, %c0_35], %62 {strides = array<i32>} : memref<2x64xf32, #tpu.memory_space<vmem>>, vector<1x64xf32>,
      %c1_36 = arith.constant 1 : index
      %c0_37 = arith.constant 0 : index
      %64 = vector.load %arg7[%c1_36, %c0_37] : memref<2x64xf32, #tpu.memory_space<vmem>>, vector<1x64xf32>
      %65 = arith.mulf %58, %58 : vector<8x64xf32>
      %cst_38 = arith.constant dense<0.000000e+00> : vector<64xf32>
      %66 = vector.multi_reduction <add>, %65, %cst_38 [0] : vector<8x64xf32> to vector<64xf32>
      %67 = vector.shape_cast %66 : vector<64xf32> to vector<1x64xf32>
      %68 = arith.addf %64, %67 : vector<1x64xf32>
      %c1_39 = arith.constant 1 : index
      %c0_40 = arith.constant 0 : index
      %69 = vector.load %arg7[%c1_39, %c0_40] : memref<2x64xf32, #tpu.memory_space<vmem>>, vector<1x64xf32>
      tpu.vector_store %arg7[%c1_39, %c0_40], %68 {strides = array<i32>} : memref<2x64xf32, #tpu.memory_space<vmem>>, vector<1x64xf32>,
    } else {
    }
    %c2_i32 = arith.constant 2 : i32
    %14 = arith.cmpi eq, %arg0, %c2_i32 : i32
    %15 = arith.extui %14 : i1 to i32
    %c0_i32_6 = arith.constant 0 : i32
    %16 = arith.cmpi ne, %15, %c0_i32_6 : i32
    scf.if %16 {
      %c9 = arith.constant 9 : index
      %c0_7 = arith.constant 0 : index
      %17 = vector.load %arg3[%c9, %c0_7] : memref<11x32xf32, #tpu.memory_space<vmem>>, vector<1x32xf32>
      %c10 = arith.constant 10 : index
      %c0_8 = arith.constant 0 : index
      %18 = vector.load %arg3[%c10, %c0_8] : memref<11x32xf32, #tpu.memory_space<vmem>>, vector<1x32xf32>
      %c0_9 = arith.constant 0 : index
      %c0_10 = arith.constant 0 : index
      %19 = vector.load %arg6[%c0_9, %c0_10] : memref<2x32xf32, #tpu.memory_space<vmem>>, vector<1x32xf32>
      %cst_11 = arith.constant 1.250000e-01 : f32
      %20 = vector.broadcast %cst_11 : f32 to vector<1x32xf32>
      %21 = arith.mulf %19, %20 : vector<1x32xf32>
      %c1 = arith.constant 1 : index
      %c0_12 = arith.constant 0 : index
      %22 = vector.load %arg6[%c1, %c0_12] : memref<2x32xf32, #tpu.memory_space<vmem>>, vector<1x32xf32>
      %cst_13 = arith.constant 1.250000e-01 : f32
      %23 = vector.broadcast %cst_13 : f32 to vector<1x32xf32>
      %24 = arith.mulf %22, %23 : vector<1x32xf32>
      %25 = arith.mulf %21, %21 : vector<1x32xf32>
      %26 = arith.subf %24, %25 : vector<1x32xf32>
      %cst_14 = arith.constant 0.000000e+00 : f32
      %27 = vector.broadcast %cst_14 : f32 to vector<1x32xf32>
      %28 = arith.maximumf %26, %27 : vector<1x32xf32>
      %cst_15 = arith.constant 9.99999974E-6 : f32
      %29 = vector.broadcast %cst_15 : f32 to vector<1x32xf32>
      %30 = arith.addf %28, %29 : vector<1x32xf32>
      %31 = math.rsqrt %30 : vector<1x32xf32>
      %32 = arith.mulf %17, %31 : vector<1x32xf32>
      %c0_16 = arith.constant 0 : index
      %c0_17 = arith.constant 0 : index
      %33 = vector.load %arg8[%c0_16, %c0_17] : memref<1x32xf32, #tpu.memory_space<vmem>>, vector<1x32xf32>
      %34 = arith.addf %33, %21 : vector<1x32xf32>
      %35 = arith.mulf %34, %32 : vector<1x32xf32>
      %36 = arith.subf %18, %35 : vector<1x32xf32>
      %c0_18 = arith.constant 0 : index
      %c0_19 = arith.constant 0 : index
      %37 = vector.load %arg3[%c0_18, %c0_19] : memref<11x32xf32, #tpu.memory_space<vmem>>, vector<8x32xf32>
      %cst_20 = arith.constant dense<0.000000e+00> : vector<8x32xf32>
      %38 = tpu.matmul %2, %37, %cst_20 {dimension_numbers = #tpu.dot_dimension_numbers<[1], [0], [0], [1], [0, 0, 1, 1], [], []>} : vector<8x8xf32>, vector<8x32xf32>, vector<8x32xf32> -> vector<8x32xf32>
      %c8 = arith.constant 8 : index
      %c0_21 = arith.constant 0 : index
      %39 = vector.load %arg3[%c8, %c0_21] : memref<11x32xf32, #tpu.memory_space<vmem>>, vector<1x32xf32>
      %40 = vector.broadcast %39 : vector<1x32xf32> to vector<8x32xf32>
      %41 = arith.addf %38, %40 : vector<8x32xf32>
      %42 = vector.broadcast %32 : vector<1x32xf32> to vector<8x32xf32>
      %43 = arith.mulf %41, %42 : vector<8x32xf32>
      %44 = vector.broadcast %36 : vector<1x32xf32> to vector<8x32xf32>
      %45 = arith.addf %43, %44 : vector<8x32xf32>
      %cst_22 = arith.constant 0.000000e+00 : f32
      %46 = vector.broadcast %cst_22 : f32 to vector<8x32xf32>
      %47 = arith.maximumf %45, %46 : vector<8x32xf32>
      %c0_23 = arith.constant 0 : index
      %c0_24 = arith.constant 0 : index
      %48 = vector.load %arg4[%c0_23, %c0_24] : memref<35x64xf32, #tpu.memory_space<vmem>>, vector<32x64xf32>
      %cst_25 = arith.constant dense<0.000000e+00> : vector<8x64xf32>
      %49 = tpu.matmul %47, %48, %cst_25 {dimension_numbers = #tpu.dot_dimension_numbers<[1], [0], [0], [1], [0, 0, 1, 1], [], []>} : vector<8x32xf32>, vector<32x64xf32>, vector<8x64xf32> -> vector<8x64xf32>
      %c32 = arith.constant 32 : index
      %c0_26 = arith.constant 0 : index
      %50 = vector.load %arg4[%c32, %c0_26] : memref<35x64xf32, #tpu.memory_space<vmem>>, vector<1x64xf32>
      %51 = vector.broadcast %50 : vector<1x64xf32> to vector<8x64xf32>
      %52 = arith.addf %49, %51 : vector<8x64xf32>
      %c33 = arith.constant 33 : index
      %c0_27 = arith.constant 0 : index
      %53 = vector.load %arg4[%c33, %c0_27] : memref<35x64xf32, #tpu.memory_space<vmem>>, vector<1x64xf32>
      %c34 = arith.constant 34 : index
      %c0_28 = arith.constant 0 : index
      %54 = vector.load %arg4[%c34, %c0_28] : memref<35x64xf32, #tpu.memory_space<vmem>>, vector<1x64xf32>
      %c0_29 = arith.constant 0 : index
      %c0_30 = arith.constant 0 : index
      %55 = vector.load %arg7[%c0_29, %c0_30] : memref<2x64xf32, #tpu.memory_space<vmem>>, vector<1x64xf32>
      %cst_31 = arith.constant 1.250000e-01 : f32
      %56 = vector.broadcast %cst_31 : f32 to vector<1x64xf32>
      %57 = arith.mulf %55, %56 : vector<1x64xf32>
      %c1_32 = arith.constant 1 : index
      %c0_33 = arith.constant 0 : index
      %58 = vector.load %arg7[%c1_32, %c0_33] : memref<2x64xf32, #tpu.memory_space<vmem>>, vector<1x64xf32>
      %cst_34 = arith.constant 1.250000e-01 : f32
      %59 = vector.broadcast %cst_34 : f32 to vector<1x64xf32>
      %60 = arith.mulf %58, %59 : vector<1x64xf32>
      %61 = arith.mulf %57, %57 : vector<1x64xf32>
      %62 = arith.subf %60, %61 : vector<1x64xf32>
      %cst_35 = arith.constant 0.000000e+00 : f32
      %63 = vector.broadcast %cst_35 : f32 to vector<1x64xf32>
      %64 = arith.maximumf %62, %63 : vector<1x64xf32>
      %cst_36 = arith.constant 9.99999974E-6 : f32
      %65 = vector.broadcast %cst_36 : f32 to vector<1x64xf32>
      %66 = arith.addf %64, %65 : vector<1x64xf32>
      %67 = math.rsqrt %66 : vector<1x64xf32>
      %68 = arith.mulf %53, %67 : vector<1x64xf32>
      %c0_37 = arith.constant 0 : index
      %c0_38 = arith.constant 0 : index
      %69 = vector.load %arg9[%c0_37, %c0_38] : memref<1x64xf32, #tpu.memory_space<vmem>>, vector<1x64xf32>
      %70 = arith.addf %69, %57 : vector<1x64xf32>
      %71 = arith.mulf %70, %68 : vector<1x64xf32>
      %72 = arith.subf %54, %71 : vector<1x64xf32>
      %73 = vector.broadcast %68 : vector<1x64xf32> to vector<8x64xf32>
      %74 = arith.mulf %52, %73 : vector<8x64xf32>
      %75 = vector.broadcast %72 : vector<1x64xf32> to vector<8x64xf32>
      %76 = arith.addf %74, %75 : vector<8x64xf32>
      %cst_39 = arith.constant 0.000000e+00 : f32
      %77 = vector.broadcast %cst_39 : f32 to vector<8x64xf32>
      %78 = arith.maximumf %76, %77 : vector<8x64xf32>
      %c0_40 = arith.constant 0 : index
      %c0_41 = arith.constant 0 : index
      %79 = vector.load %arg5[%c0_40, %c0_41] : memref<8x64xf32, #tpu.memory_space<vmem>>, vector<8x64xf32>
      tpu.vector_store %arg5[%c0_40, %c0_41], %78 {strides = array<i32>} : memref<8x64xf32, #tpu.memory_space<vmem>>, vector<8x64xf32>,
    } else {
    }
    return
  }
  func.func @transform_0(%arg0: i32, %arg1: i32) -> (i32, i32) {
    %c0_i32 = arith.constant 0 : i32
    %c0_i32_0 = arith.constant 0 : i32
    return %arg1, %c0_i32 : i32, i32
  }
  func.func @transform_1(%arg0: i32, %arg1: i32) -> (i32, i32) {
    %c0_i32 = arith.constant 0 : i32
    %c0_i32_0 = arith.constant 0 : i32
    %c0_i32_1 = arith.constant 0 : i32
    return %c0_i32, %c0_i32_0 : i32, i32
  }
  func.func @transform_2(%arg0: i32, %arg1: i32) -> (i32, i32) {
    %c0_i32 = arith.constant 0 : i32
    %c0_i32_0 = arith.constant 0 : i32
    %c0_i32_1 = arith.constant 0 : i32
    return %c0_i32, %c0_i32_0 : i32, i32
  }
  func.func @transform_3(%arg0: i32, %arg1: i32) -> (i32, i32) {
    %c2_i32 = arith.constant 2 : i32
    %0 = arith.cmpi eq, %arg0, %c2_i32 : i32
    %c0_i32 = arith.constant 0 : i32
    %1 = arith.select %0, %arg1, %c0_i32 : i32
    %c0_i32_0 = arith.constant 0 : i32
    %c0_i32_1 = arith.constant 0 : i32
    return %1, %c0_i32_0 : i32, i32
  }
}

</mosaic_0001>

<llo_original>
// kernel: dvl_encoder.1
$region0: #{dvl_encoder.1}
  #allocation0 [shape = 'u32[]', space=smem, size = 0x4, offset = 0x4, fixed_abs, tag = 'smem constant byte address 0x4 - core index']
  #allocation1 [shape = 'u32[72,128]{1,0:T(1,128)}', space=vmem, size = 0x9000, scoped, tag = 'internal scratch']
  #allocation2 [shape = 'f32[2,32]{1,0:T(2,128)}', space=vmem, size = 0x400, scoped, tag = 'scratch operand']
  #allocation3 [shape = 'f32[2,64]{1,0:T(2,128)}', space=vmem, size = 0x400, scoped, tag = 'scratch operand']
  #allocation4 [shape = 'f32[1,32]{1,0:T(1,128)}', space=vmem, size = 0x200, scoped, tag = 'scratch operand']
  #allocation5 [shape = 'f32[1,64]{1,0:T(1,128)}', space=vmem, size = 0x200, scoped, tag = 'scratch operand']
  %s0 = inlined_call_operand.vmem [shape: f32[8,3], index: 0, kind: input, shape index: {}]
  %s1 = inlined_call_operand.hbm [shape: f32[11,32], index: 1, kind: input, shape index: {}]
  %s2 = inlined_call_operand.hbm [shape: f32[35,64], index: 2, kind: input, shape index: {}]
  %s3 = inlined_call_operand.hbm [shape: f32[8,64], index: 3, kind: output, shape index: {}]
  %s4 = sld [smem:[#allocation0]]
  $region77: #{dvl_encoder.1} parent=0
    _
  %s6 = ssub.s32 1, %s4
  %s7 = scalar_select 0, %s6, %s4
  $region1: #{dvl_encoder.1} parent=0
    #allocation6 [shape = 'u8[8192]{0}', space=vmem, size = 0x2000, scoped, tag = 'input window, operand 1, single buffered']
    #allocation7 [shape = 's32[2]{0}', space=sflag, size = 0x8, scoped, tag = 'scoped memory for dvl_encoder.1']
    #allocation8 [shape = 's32[2]{0}', space=sflag, size = 0x8, scoped, tag = 'scoped memory for dvl_encoder.1']
    #allocation9 [shape = 'u8[20480]{0}', space=vmem, size = 0x5000, scoped, tag = 'input window, operand 2, single buffered']
    #allocation10 [shape = 's32[1]{0}', space=sflag, size = 0x4, scoped, tag = 'scoped memory for dvl_encoder.1']
    #allocation11 [shape = 'u8[8192]{0}', space=vmem, size = 0x2000, scoped, tag = 'output window, operand 0']
    %8 = vsyncpa [#allocation7], 0
    %9 = vsyncpa [#allocation10], 0
    %10 = vsyncpa [#allocation8], 0
    %s11 = scalar_lea.sflag [#allocation8], 1
    %12 = vsyncpa %s11, 0
    loop: start=0, step=1, limit=5
    $region2: #{dvl_encoder.1} parent=1 // loop_pre_header
      _
    $region3: #{dvl_encoder.1} parent=1 // loop_header
      %s14 = sphi 0, %s18
      %p15 = scmp.ge.s32.totalorder %s14, 5
      %s21 = sphi 0, %s33
      %s22 = sphi 0, %s29
      %s23 = sphi 0, %s21
      %s24 = sphi 0, %s22
      %s25 = sphi 0, %s23
      %s26 = sphi 0, %s24
      %s36 = sphi 0, %s38
      %s39 = sphi 0, %s36
      %s40 = sphi 0, %s39
      %s56 = sphi 0, %s40
      %s60 = sphi 0, %s60
      %s62 = sphi 0, %s60
      %s63 = sphi 0, %s62
      %s77 = sphi 0, %s63
      %s81 = sphi 0, %s81
      %s83 = sphi 0, %s81
      %s84 = sphi 0, %s83
      %s98 = sphi 0, %s84
      %s108 = sphi 0, %s110
      %s111 = sphi 0, %s108
      %s112 = sphi 0, %s111
      %s128 = sphi 0, %s112
    $region4: #{dvl_encoder.1} parent=1 // loop_header_branch
      %17 = sbr.rel (%p15) target = $region8
    $region5: #{dvl_encoder.1} parent=1 // loop_body
      %s19 = ssub.s32 %s14, 1
      %s20 = ssub.s32 %s14, 2
      %s27 = sadd.s32 1, %s22
      %p28 = scmp.ge.s32.totalorder %s27, 1
      %s29 = scalar_select %p28, 0, %s27
      %s30 = sadd.s32 1, %s21
      %s31 = scalar_select %p28, %s30, %s21
      %p32 = scmp.ge.s32.totalorder %s31, 3
      %s33 = scalar_select %p32, 0, %s31
      %s34 = ssub.s32 %s22, %s29
      %p35 = scmp.eq.s32.totalorder %s34, 0
      %s37 = sadd.s32 %s36, 1
      %s38 = scalar_select %p35, %s36, %s37
      %p41 = pneg %p35
      %p42 = scmp.eq.s32.totalorder %s14, 2
      %p43 = por %p41, %p42
      %p44 = scmp.ne.s32.totalorder %s36, %s39
      %p45 = scmp.eq.s32.totalorder %s14, 0
      %p46 = por %p44, %p45
      %p47 = scmp.ne.s32.totalorder %s36, %s39
      %p48 = scmp.eq.s32.totalorder %s19, 2
      %p49 = por %p47, %p48
      %p50 = scmp.ne.s32.totalorder %s39, %s40
      %p51 = scmp.eq.s32.totalorder %s19, 0
      %p52 = por %p50, %p51
      %p53 = scmp.ne.s32.totalorder %s39, %s40
      %p54 = scmp.eq.s32.totalorder %s20, 2
      %p55 = por %p53, %p54
      %p57 = scmp.ne.s32.totalorder %s40, %s56
      %p58 = scmp.eq.s32.totalorder %s20, 0
      %p59 = por %p57, %p58
      %s61 = sadd.s32 %s60, 1
      %p64 = scmp.eq.s32.totalorder %s14, 2
      %p65 = scmp.ne.s32.totalorder %s60, %s62
      %p66 = scmp.eq.s32.totalorder %s14, 0
      %p67 = por %p65, %p66
      %p68 = scmp.ne.s32.totalorder %s60, %s62
      %p69 = scmp.eq.s32.totalorder %s19, 2
      %p70 = por %p68, %p69
      %p71 = scmp.ne.s32.totalorder %s62, %s63
      %p72 = scmp.eq.s32.totalorder %s19, 0
      %p73 = por %p71, %p72
      %p74 = scmp.ne.s32.totalorder %s62, %s63
      %p75 = scmp.eq.s32.totalorder %s20, 2
      %p76 = por %p74, %p75
      %p78 = scmp.ne.s32.totalorder %s63, %s77
      %p79 = scmp.eq.s32.totalorder %s20, 0
      %p80 = por %p78, %p79
      %s82 = sadd.s32 %s81, 1
      %p85 = scmp.eq.s32.totalorder %s14, 2
      %p86 = scmp.ne.s32.totalorder %s81, %s83
      %p87 = scmp.eq.s32.totalorder %s14, 0
      %p88 = por %p86, %p87
      %p89 = scmp.ne.s32.totalorder %s81, %s83
      %p90 = scmp.eq.s32.totalorder %s19, 2
      %p91 = por %p89, %p90
      %p92 = scmp.ne.s32.totalorder %s83, %s84
      %p93 = scmp.eq.s32.totalorder %s19, 0
      %p94 = por %p92, %p93
      %p95 = scmp.ne.s32.totalorder %s83, %s84
      %p96 = scmp.eq.s32.totalorder %s20, 2
      %p97 = por %p95, %p96
      %p99 = scmp.ne.s32.totalorder %s84, %s98
      %p100 = scmp.eq.s32.totalorder %s20, 0
      %p101 = por %p99, %p100
      %p102 = scmp.eq.s32.totalorder %s21, 2
      %s103 = scalar_select %p102, %s22, 0
      %p104 = scmp.eq.s32.totalorder %s33, 2
      %s105 = scalar_select %p104, %s29, 0
      %s106 = ssub.s32 %s103, %s105
      %p107 = scmp.eq.s32.totalorder %s106, 0
      %s109 = sadd.s32 %s108, 1
      %s110 = scalar_select %p107, %s108, %s109
      %p113 = pneg %p107
      %p114 = scmp.eq.s32.totalorder %s14, 2
      %p115 = por %p113, %p114
      %p116 = scmp.ne.s32.totalorder %s108, %s111
      %p117 = scmp.eq.s32.totalorder %s14, 0
      %p118 = por %p116, %p117
      %p119 = scmp.ne.s32.totalorder %s108, %s111
      %p120 = scmp.eq.s32.totalorder %s19, 2
      %p121 = por %p119, %p120
      %p122 = scmp.ne.s32.totalorder %s111, %s112
      %p123 = scmp.eq.s32.totalorder %s19, 0
      %p124 = por %p122, %p123
      %p125 = scmp.ne.s32.totalorder %s111, %s112
      %p126 = scmp.eq.s32.totalorder %s20, 2
      %p127 = por %p125, %p126
      %p129 = scmp.ne.s32.totalorder %s112, %s128
      %p130 = scmp.eq.s32.totalorder %s20, 0
      %p131 = por %p129, %p130
      %p132 = scmp.le.s32.totalorder 1, %s14
      %p133 = scmp.lt.s32.totalorder %s14, 4
      %p134 = pnand %p132, %p133
      %p135 = pneg %p134
      // Predicated region
      $region9: #{dvl_encoder.1} parent=5 // pred_check
        _
      $region10: #{dvl_encoder.1} parent=5 // pred_check_branch
        %137 = sbr.rel (%p134) target = $region12
      $region11: #{dvl_encoder.1} parent=5 // pred_region
        %s138 = ssub.s32 %s14, 1
        // Predicated region
        $region13: #{dvl_encoder.1} parent=11 // pred_check
          %p139 = pneg %p52
        $region14: #{dvl_encoder.1} parent=11 // pred_check_branch
          %141 = sbr.rel (%p139) target = $region16
        $region15: #{dvl_encoder.1} parent=11 // pred_region
          %p142 = scmp.lt.s32.totalorder %s24, 0
          %s143 = scalar_select %p142, %s24, 0
          %s144 = smul.addr %s143, 8
          %s145 = scalar_lea.vmem %s0, %s144
        $region16: #{dvl_encoder.1} parent=11 // pred_fallthru
          _
        // Predicated region
        $region17: #{dvl_encoder.1} parent=11 // pred_check
          %p146 = pneg %p73
        $region18: #{dvl_encoder.1} parent=11 // pred_check_branch
          %148 = sbr.rel (%p146) target = $region20
        $region19: #{dvl_encoder.1} parent=11 // pred_region
          %150 = vsyncadd [#allocation7], 0
          %s151 = sshll.u32 %s1, 4
          %s152 = int_to_ptr.hbm [resolvable:$true] %s151
          %s153 = sshll.u32 [#allocation6], 4
          %s154 = int_to_ptr.vmem [resolvable:$true] %s153
          %159 = dma.hbm_to_vmem [thread:$0]  %s152, 256, %s154, [#allocation7], 128, 128, 8
        $region20: #{dvl_encoder.1} parent=11 // pred_fallthru
          _
        // Predicated region
        $region21: #{dvl_encoder.1} parent=11 // pred_check
          %p160 = pneg %p94
        $region22: #{dvl_encoder.1} parent=11 // pred_check_branch
          %162 = sbr.rel (%p160) target = $region24
        $region23: #{dvl_encoder.1} parent=11 // pred_region
          %164 = vsyncadd [#allocation10], 0
          %s165 = sshll.u32 %s2, 4
          %s166 = int_to_ptr.hbm [resolvable:$true] %s165
          %s167 = sshll.u32 [#allocation9], 4
          %s168 = int_to_ptr.vmem [resolvable:$true] %s167
          %173 = dma.hbm_to_vmem [thread:$0]  %s166, 640, %s168, [#allocation10], 128, 128, 8
        $region24: #{dvl_encoder.1} parent=11 // pred_fallthru
          _
      $region12: #{dvl_encoder.1} parent=5 // pred_fallthru
        _
      %p174 = scmp.lt.s32.totalorder %s14, 3
      // Predicated region
      $region25: #{dvl_encoder.1} parent=5 // pred_check
        %p175 = pneg %p174
      $region26: #{dvl_encoder.1} parent=5 // pred_check_branch
        %177 = sbr.rel (%p175) target = $region28
      $region27: #{dvl_encoder.1} parent=5 // pred_region
        _
      $region28: #{dvl_encoder.1} parent=5 // pred_fallthru
        _
      %p178 = scmp.le.s32.totalorder 1, %s14
      %p179 = scmp.lt.s32.totalorder %s14, 4
      %p180 = pnand %p178, %p179
      %p181 = pneg %p180
      // Predicated region
      $region29: #{dvl_encoder.1} parent=5 // pred_check
        _
      $region30: #{dvl_encoder.1} parent=5 // pred_check_branch
        %183 = sbr.rel (%p180) target = $region32
      $region31: #{dvl_encoder.1} parent=5 // pred_region
        %s184 = ssub.s32 %s14, 1
        // Predicated region
        $region33: #{dvl_encoder.1} parent=31 // pred_check
          %p185 = pneg %p73
        $region34: #{dvl_encoder.1} parent=31 // pred_check_branch
          %187 = sbr.rel (%p185) target = $region36
        $region35: #{dvl_encoder.1} parent=31 // pred_region
          %189 = dma.done [#allocation7], 256
        $region36: #{dvl_encoder.1} parent=31 // pred_fallthru
          _
        // Predicated region
        $region37: #{dvl_encoder.1} parent=31 // pred_check
          %p190 = pneg %p94
        $region38: #{dvl_encoder.1} parent=31 // pred_check_branch
          %192 = sbr.rel (%p190) target = $region40
        $region39: #{dvl_encoder.1} parent=31 // pred_region
          %194 = dma.done [#allocation10], 640
        $region40: #{dvl_encoder.1} parent=31 // pred_fallthru
          _
        %p195 = scmp.lt.s32.totalorder %s24, 0
        %s196 = scalar_select %p195, %s24, 0
        %s197 = smul.addr %s196, 8
        %s198 = scalar_lea.vmem %s0, %s197
        %p199 = pneg %p52
        %p200 = pneg %p49
        %p201 = pneg %p73
        %p202 = pneg %p70
        %p203 = pneg %p94
        %p204 = pneg %p91
        %p205 = pneg %p124
        %p206 = pneg %p121
        %s207 = sand.u32 %s111, 1
        %s208 = scalar_lea.sflag [#allocation8], %s207
        %s209 = sand.u32 %s111, 1
        %s210 = smul.addr %s209, 8
        %s211 = scalar_lea.vmem [#allocation11], %s210
        %p212 = scmp.lt.s32.totalorder %s24, 0
        %s213 = scalar_select %p212, %s24, 0
        %s214 = smul.addr %s213, 8
        %s215 = scalar_lea.vmem %s0, %s214
        %p216 = scmp.eq.s32.totalorder %s23, 2
        %s217 = scalar_select %p216, %s24, 0
        %v218 = vld [vmem:[%s215] sm:$0xff]
        %vm219 = vcmask 23552
        %v220 = vsel %vm219, %v218, 0.0
        %p221 = scmp.eq.s32.totalorder %s23, 0
        %p222 = scmp.eq.s32.totalorder %s24, 0
        %p223 = pnand %p221, %p222
        %p224 = pneg %p223
        // Predicated region
        $region41: #{dvl_encoder.1} parent=31 // pred_check
          _
        $region42: #{dvl_encoder.1} parent=31 // pred_check_branch
          %226 = sbr.rel (%p223) target = $region44
        $region43: #{dvl_encoder.1} parent=31 // pred_region
          %vm227 = vcmask 254976
          %228 = vst.msk [vmem:[#allocation2] sm:$0x3] %vm227, 0.0
          %vm229 = vcmask 517120
          %230 = vst.msk [vmem:[#allocation3] sm:$0x3] %vm229, 0.0
        $region44: #{dvl_encoder.1} parent=31 // pred_fallthru
          _
        // Predicated region
        $region45: #{dvl_encoder.1} parent=31 // pred_check
          %p231 = pneg %p221
        $region46: #{dvl_encoder.1} parent=31 // pred_check_branch
          %233 = sbr.rel (%p231) target = $region48
        $region47: #{dvl_encoder.1} parent=31 // pred_region
          %v234 = vld [vmem:[#allocation6] sm:$0xff]
          %v235 = vld [vmem:[#allocation6 + $0x8] sm:$0x1]
          %v236 = vperm.slane %v235, 0
          %vm237 = vcmask 64512
          %v239 = vsel %vm237, %v220, 0
          %241 = vmatpush.msra.mxu0 0.0
          %242 = vmatpush.msra.mxu0 0.0
          %243 = vmatpush.msra.mxu0 0.0
          %244 = vmatpush.msra.mxu0 0.0
          %245 = vmatpush.msra.mxu0 0.0
          %246 = vmatpush.msra.mxu0 0.0
          %247 = vmatpush.msra.mxu0 0.0
          %248 = vmatpush.msra.mxu0 0.0
          %249 = vmatpush.msra.mxu0 0.0
          %250 = vmatpush.msra.mxu0 0.0
          %251 = vmatpush.msra.mxu0 0.0
          %252 = vmatpush.msra.mxu0 0.0
          %253 = vmatpush.msra.mxu0 0.0
          %254 = vmatpush.msra.mxu0 0.0
          %255 = vmatpush.msra.mxu0 0.0
          %256 = vmatpush.msra.mxu0 %v234
          %257 = vmatmul.f32.gmra.mxu0 %v239
          %v258 = vpop.f32.mrf.mxu0
          %v259 = vadd.f32 %v236, %v258
          %260 = vdwg.mxu0
          // Predicated region
          $region49: #{dvl_encoder.1} parent=47 // pred_check
            %p261 = pneg %p222
          $region50: #{dvl_encoder.1} parent=47 // pred_check_branch
            %263 = sbr.rel (%p261) target = $region52
          $region51: #{dvl_encoder.1} parent=47 // pred_region
            %vm264 = vcmask 253952
            %265 = vst.msk [vmem:[#allocation4] sm:$0x1] %vm264, %v259
          $region52: #{dvl_encoder.1} parent=47 // pred_fallthru
            _
          %v266 = vld [vmem:[#allocation4] sm:$0x1]
          %v268 = vperm.slane %v266, 0
          %v270 = vsub.f32 %v259, %v268
          %v271 = vld [vmem:[#allocation2] sm:$0x1]
          %vm272 = vcmask 261120
          %v273 = vsel %vm272, %v270, 0.0
          %v274 = vrot.slane %v273, 4
          %v275 = vadd.f32 %v273, %v274
          %v276 = vrot.slane %v275, 2
          %v277 = vadd.f32 %v275, %v276
          %v278 = vrot.slane %v277, 1
          %v279 = vadd.f32 %v277, %v278
          %v280 = vadd.f32 %v271, %v279
          %vm281 = vcmask 253952
          %282 = vst.msk [vmem:[#allocation2] sm:$0x1] %vm281, %v280
          %v283 = vld [vmem:[#allocation2 + $0x1] sm:$0x1]
          %v284 = vmul.f32 %v270, %v270
          %v285 = vsel %vm272, %v284, 0.0
          %v286 = vrot.slane %v285, 4
          %v287 = vadd.f32 %v285, %v286
          %v288 = vrot.slane %v287, 2
          %v289 = vadd.f32 %v287, %v288
          %v290 = vrot.slane %v289, 1
          %v291 = vadd.f32 %v289, %v290
          %v292 = vadd.f32 %v283, %v291
          %293 = vst.msk [vmem:[#allocation2 + $0x1] sm:$0x1] %vm281, %v292
        $region48: #{dvl_encoder.1} parent=31 // pred_fallthru
          _
        %p294 = scmp.eq.s32.totalorder %s23, 1
        // Predicated region
        $region53: #{dvl_encoder.1} parent=31 // pred_check
          %p295 = pneg %p294
        $region54: #{dvl_encoder.1} parent=31 // pred_check_branch
          %297 = sbr.rel (%p295) target = $region56
        $region55: #{dvl_encoder.1} parent=31 // pred_region
          %v298 = vld [vmem:[#allocation6 + $0x9] sm:$0x1]
          %v299 = vld [vmem:[#allocation6 + $0xa] sm:$0x1]
          %v300 = vld [vmem:[#allocation2] sm:$0x1]
          %v301 = vmul.f32 %v300, 0.125
          %v302 = vld [vmem:[#allocation2 + $0x1] sm:$0x1]
          %v303 = vmul.f32 %v302, 0.125
          %v304 = vmul.f32 %v301, %v301
          %v305 = vsub.f32 %v303, %v304
          %v306 = vmax.f32 %v305, 0.0
          %v307 = vadd.f32 %v306, 1e-05
          %v308 = vrsqrt.pop %v307
          %v309 = vmul.f32 %v308, %v307
          %v310 = vmul.f32 %v309, %v308
          %v311 = vmul.f32 0.5, %v310
          %v312 = vsub.f32 1.5, %v311
          %v313 = vmul.f32 %v308, %v312
          %vm314 = vweird.f32 %v307
          %vm315 = vweird.f32 %v308
          %vm316 = vmor %vm314, %vm315
          %v317 = vsel %vm316, %v308, %v313
          %v318 = vmul.f32 %v298, %v317
          %v319 = vld [vmem:[#allocation4] sm:$0x1]
          %v320 = vadd.f32 %v319, %v301
          %v321 = vmul.f32 %v320, %v318
          %v322 = vsub.f32 %v299, %v321
          %v323 = vld [vmem:[#allocation6] sm:$0xff]
          %v324 = vld [vmem:[#allocation6 + $0x8] sm:$0x1]
          %v325 = vperm.slane %v324, 0
          %vm326 = vcmask 64512
          %v328 = vsel %vm326, %v220, 0
          %330 = vmatpush.msra.mxu0 0.0
          %331 = vmatpush.msra.mxu0 0.0
          %332 = vmatpush.msra.mxu0 0.0
          %333 = vmatpush.msra.mxu0 0.0
          %334 = vmatpush.msra.mxu0 0.0
          %335 = vmatpush.msra.mxu0 0.0
          %336 = vmatpush.msra.mxu0 0.0
          %337 = vmatpush.msra.mxu0 0.0
          %338 = vmatpush.msra.mxu0 0.0
          %339 = vmatpush.msra.mxu0 0.0
          %340 = vmatpush.msra.mxu0 0.0
          %341 = vmatpush.msra.mxu0 0.0
          %342 = vmatpush.msra.mxu0 0.0
          %343 = vmatpush.msra.mxu0 0.0
          %344 = vmatpush.msra.mxu0 0.0
          %345 = vmatpush.msra.mxu0 %v323
          %346 = vmatmul.f32.gmra.mxu0 %v328
          %v347 = vpop.f32.mrf.mxu0
          %v348 = vadd.f32 %v325, %v347
          %349 = vdwg.mxu0
          %v350 = vperm.slane %v318, 0
          %v351 = vmul.f32 %v348, %v350
          %v352 = vperm.slane %v322, 0
          %v353 = vadd.f32 %v351, %v352
          %v354 = vmax.f32 %v353, 0.0
          %v355 = vld [vmem:[#allocation9] sm:$0xff]
          %v356 = vld [vmem:[#allocation9 + $0x8] sm:$0xff]
          %v357 = vld [vmem:[#allocation9 + $0x10] sm:$0xff]
          %v358 = vld [vmem:[#allocation9 + $0x18] sm:$0xff]
          %v359 = vld [vmem:[#allocation9 + $0x20] sm:$0x1]
          %v360 = vperm.slane %v359, 0
          %vm361 = vcmask 261120
          %v363 = vsel %vm361, %v354, 0
          %365 = vmatpush.msra.mxu0 0.0
          %366 = vmatpush.msra.mxu0 0.0
          %367 = vmatpush.msra.mxu0 0.0
          %368 = vmatpush.msra.mxu0 0.0
          %369 = vmatpush.msra.mxu0 0.0
          %370 = vmatpush.msra.mxu0 0.0
          %371 = vmatpush.msra.mxu0 0.0
          %372 = vmatpush.msra.mxu0 0.0
          %373 = vmatpush.msra.mxu0 0.0
          %374 = vmatpush.msra.mxu0 0.0
          %375 = vmatpush.msra.mxu0 0.0
          %376 = vmatpush.msra.mxu0 0.0
          %377 = vmatpush.msra.mxu0 %v358
          %378 = vmatpush.msra.mxu0 %v357
          %379 = vmatpush.msra.mxu0 %v356
          %380 = vmatpush.msra.mxu0 %v355
          %381 = vmatmul.f32.gmra.mxu0 %v363
          %v382 = vpop.f32.mrf.mxu0
          %v383 = vadd.f32 %v360, %v382
          %384 = vdwg.mxu0
          // Predicated region
          $region57: #{dvl_encoder.1} parent=55 // pred_check
            %p385 = pneg %p222
          $region58: #{dvl_encoder.1} parent=55 // pred_check_branch
            %387 = sbr.rel (%p385) target = $region60
          $region59: #{dvl_encoder.1} parent=55 // pred_region
            %vm388 = vcmask 516096
            %389 = vst.msk [vmem:[#allocation5] sm:$0x1] %vm388, %v383
          $region60: #{dvl_encoder.1} parent=55 // pred_fallthru
            _
          %v390 = vld [vmem:[#allocation5] sm:$0x1]
          %v392 = vperm.slane %v390, 0
          %v394 = vsub.f32 %v383, %v392
          %v395 = vld [vmem:[#allocation3] sm:$0x1]
          %vm396 = vcmask 523264
          %v397 = vsel %vm396, %v394, 0.0
          %v398 = vrot.slane %v397, 4
          %v399 = vadd.f32 %v397, %v398
          %v400 = vrot.slane %v399, 2
          %v401 = vadd.f32 %v399, %v400
          %v402 = vrot.slane %v401, 1
          %v403 = vadd.f32 %v401, %v402
          %v404 = vadd.f32 %v395, %v403
          %vm405 = vcmask 516096
          %406 = vst.msk [vmem:[#allocation3] sm:$0x1] %vm405, %v404
          %v407 = vld [vmem:[#allocation3 + $0x1] sm:$0x1]
          %v408 = vmul.f32 %v394, %v394
          %v409 = vsel %vm396, %v408, 0.0
          %v410 = vrot.slane %v409, 4
          %v411 = vadd.f32 %v409, %v410
          %v412 = vrot.slane %v411, 2
          %v413 = vadd.f32 %v411, %v412
          %v414 = vrot.slane %v413, 1
          %v415 = vadd.f32 %v413, %v414
          %v416 = vadd.f32 %v407, %v415
          %417 = vst.msk [vmem:[#allocation3 + $0x1] sm:$0x1] %vm405, %v416
        $region56: #{dvl_encoder.1} parent=31 // pred_fallthru
          _
        %p418 = scmp.eq.s32.totalorder %s23, 2
        // Predicated region
        $region61: #{dvl_encoder.1} parent=31 // pred_check
          %p419 = pneg %p418
        $region62: #{dvl_encoder.1} parent=31 // pred_check_branch
          %421 = sbr.rel (%p419) target = $region64
        $region63: #{dvl_encoder.1} parent=31 // pred_region
          %v422 = vld [vmem:[#allocation6 + $0x9] sm:$0x1]
          %v423 = vld [vmem:[#allocation6 + $0xa] sm:$0x1]
          %v424 = vld [vmem:[#allocation2] sm:$0x1]
          %v425 = vmul.f32 %v424, 0.125
          %v426 = vld [vmem:[#allocation2 + $0x1] sm:$0x1]
          %v427 = vmul.f32 %v426, 0.125
          %v428 = vmul.f32 %v425, %v425
          %v429 = vsub.f32 %v427, %v428
          %v430 = vmax.f32 %v429, 0.0
          %v431 = vadd.f32 %v430, 1e-05
          %v432 = vrsqrt.pop %v431
          %v433 = vmul.f32 %v432, %v431
          %v434 = vmul.f32 %v433, %v432
          %v435 = vmul.f32 0.5, %v434
          %v436 = vsub.f32 1.5, %v435
          %v437 = vmul.f32 %v432, %v436
          %vm438 = vweird.f32 %v431
          %vm439 = vweird.f32 %v432
          %vm440 = vmor %vm438, %vm439
          %v441 = vsel %vm440, %v432, %v437
          %v442 = vmul.f32 %v422, %v441
          %v443 = vld [vmem:[#allocation4] sm:$0x1]
          %v444 = vadd.f32 %v443, %v425
          %v445 = vmul.f32 %v444, %v442
          %v446 = vsub.f32 %v423, %v445
          %v447 = vld [vmem:[#allocation6] sm:$0xff]
          %v448 = vld [vmem:[#allocation6 + $0x8] sm:$0x1]
          %v449 = vperm.slane %v448, 0
          %vm450 = vcmask 64512
          %v452 = vsel %vm450, %v220, 0
          %454 = vmatpush.msra.mxu0 0.0
          %455 = vmatpush.msra.mxu0 0.0
          %456 = vmatpush.msra.mxu0 0.0
          %457 = vmatpush.msra.mxu0 0.0
          %458 = vmatpush.msra.mxu0 0.0
          %459 = vmatpush.msra.mxu0 0.0
          %460 = vmatpush.msra.mxu0 0.0
          %461 = vmatpush.msra.mxu0 0.0
          %462 = vmatpush.msra.mxu0 0.0
          %463 = vmatpush.msra.mxu0 0.0
          %464 = vmatpush.msra.mxu0 0.0
          %465 = vmatpush.msra.mxu0 0.0
          %466 = vmatpush.msra.mxu0 0.0
          %467 = vmatpush.msra.mxu0 0.0
          %468 = vmatpush.msra.mxu0 0.0
          %469 = vmatpush.msra.mxu0 %v447
          %470 = vmatmul.f32.gmra.mxu0 %v452
          %v471 = vpop.f32.mrf.mxu0
          %v472 = vadd.f32 %v449, %v471
          %473 = vdwg.mxu0
          %v474 = vperm.slane %v442, 0
          %v475 = vmul.f32 %v472, %v474
          %v476 = vperm.slane %v446, 0
          %v477 = vadd.f32 %v475, %v476
          %v478 = vmax.f32 %v477, 0.0
          %v479 = vld [vmem:[#allocation9] sm:$0xff]
          %v480 = vld [vmem:[#allocation9 + $0x8] sm:$0xff]
          %v481 = vld [vmem:[#allocation9 + $0x10] sm:$0xff]
          %v482 = vld [vmem:[#allocation9 + $0x18] sm:$0xff]
          %v483 = vld [vmem:[#allocation9 + $0x20] sm:$0x1]
          %v484 = vperm.slane %v483, 0
          %vm485 = vcmask 261120
          %v487 = vsel %vm485, %v478, 0
          %489 = vmatpush.msra.mxu0 0.0
          %490 = vmatpush.msra.mxu0 0.0
          %491 = vmatpush.msra.mxu0 0.0
          %492 = vmatpush.msra.mxu0 0.0
          %493 = vmatpush.msra.mxu0 0.0
          %494 = vmatpush.msra.mxu0 0.0
          %495 = vmatpush.msra.mxu0 0.0
          %496 = vmatpush.msra.mxu0 0.0
          %497 = vmatpush.msra.mxu0 0.0
          %498 = vmatpush.msra.mxu0 0.0
          %499 = vmatpush.msra.mxu0 0.0
          %500 = vmatpush.msra.mxu0 0.0
          %501 = vmatpush.msra.mxu0 %v482
          %502 = vmatpush.msra.mxu0 %v481
          %503 = vmatpush.msra.mxu0 %v480
          %504 = vmatpush.msra.mxu0 %v479
          %505 = vmatmul.f32.gmra.mxu0 %v487
          %v506 = vpop.f32.mrf.mxu0
          %v507 = vadd.f32 %v484, %v506
          %508 = vdwg.mxu0
          %v509 = vld [vmem:[#allocation9 + $0x21] sm:$0x1]
          %v510 = vld [vmem:[#allocation9 + $0x22] sm:$0x1]
          %v511 = vld [vmem:[#allocation3] sm:$0x1]
          %v512 = vmul.f32 %v511, 0.125
          %v513 = vld [vmem:[#allocation3 + $0x1] sm:$0x1]
          %v514 = vmul.f32 %v513, 0.125
          %v515 = vmul.f32 %v512, %v512
          %v516 = vsub.f32 %v514, %v515
          %v517 = vmax.f32 %v516, 0.0
          %v518 = vadd.f32 %v517, 1e-05
          %v519 = vrsqrt.pop %v518
          %v520 = vmul.f32 %v519, %v518
          %v521 = vmul.f32 %v520, %v519
          %v522 = vmul.f32 0.5, %v521
          %v523 = vsub.f32 1.5, %v522
          %v524 = vmul.f32 %v519, %v523
          %vm525 = vweird.f32 %v518
          %vm526 = vweird.f32 %v519
          %vm527 = vmor %vm525, %vm526
          %v528 = vsel %vm527, %v519, %v524
          %v529 = vmul.f32 %v509, %v528
          %v530 = vld [vmem:[#allocation5] sm:$0x1]
          %v531 = vadd.f32 %v530, %v512
          %v532 = vmul.f32 %v531, %v529
          %v533 = vsub.f32 %v510, %v532
          %v534 = vperm.slane %v529, 0
          %v535 = vmul.f32 %v507, %v534
          %v536 = vperm.slane %v533, 0
          %v537 = vadd.f32 %v535, %v536
          %v538 = vmax.f32 %v537, 0.0
          %vm539 = vcmask 523264
          %540 = vst.msk [vmem:[%s211] sm:$0xff] %vm539, %v538
        $region64: #{dvl_encoder.1} parent=31 // pred_fallthru
          _
        %s541 = sand.u32 %s111, 1
        %s542 = scalar_lea.sflag [#allocation8], %s541
        %s543 = sand.u32 %s111, 1
        %s544 = smul.addr %s543, 8
        %s545 = scalar_lea.vmem [#allocation11], %s544
        // Predicated region
        $region65: #{dvl_encoder.1} parent=31 // pred_check
          %p546 = pneg %p121
        $region66: #{dvl_encoder.1} parent=31 // pred_check_branch
          %548 = sbr.rel (%p546) target = $region68
        $region67: #{dvl_encoder.1} parent=31 // pred_region
          %p549 = scmp.eq.s32.totalorder %s23, 2
          %s550 = scalar_select %p549, %s24, 0
          %552 = vsyncadd %s542, 0
          %s553 = smul.addr %s550, 8
          %s554 = scalar_lea.hbm %s3, %s553
          %s556 = sshll.u32 %s545, 4
          %s557 = int_to_ptr.vmem [resolvable:$true] %s556
          %s558 = sshll.u32 %s554, 4
          %s559 = int_to_ptr.hbm [resolvable:$true] %s558
          %561 = dma.vmem_to_hbm [thread:$0]  %s557, 128, %s559, %s542
        $region68: #{dvl_encoder.1} parent=31 // pred_fallthru
          _
      $region32: #{dvl_encoder.1} parent=5 // pred_fallthru
        _
      %p562 = scmp.le.s32.totalorder 2, %s14
      // Predicated region
      $region69: #{dvl_encoder.1} parent=5 // pred_check
        %p563 = pneg %p562
      $region70: #{dvl_encoder.1} parent=5 // pred_check_branch
        %565 = sbr.rel (%p563) target = $region72
      $region71: #{dvl_encoder.1} parent=5 // pred_region
        %s566 = ssub.s32 %s14, 2
        // Predicated region
        $region73: #{dvl_encoder.1} parent=71 // pred_check
          %p567 = pneg %p127
        $region74: #{dvl_encoder.1} parent=71 // pred_check_branch
          %569 = sbr.rel (%p567) target = $region76
        $region75: #{dvl_encoder.1} parent=71 // pred_region
          %s570 = sand.u32 %s112, 1
          %s571 = scalar_lea.sflag [#allocation8], %s570
          %s572 = sand.u32 %s112, 1
          %s573 = smul.addr %s572, 8
          %s574 = scalar_lea.vmem [#allocation11], %s573
          %576 = dma.done %s571, 128
        $region76: #{dvl_encoder.1} parent=71 // pred_fallthru
          _
      $region72: #{dvl_encoder.1} parent=5 // pred_fallthru
        _
    $region6: #{dvl_encoder.1} parent=1 // loop_footer
      %s18 = sadd.s32 1, %s14
    $region7: #{dvl_encoder.1} parent=1 // loop_footer_branch
      %13 = sbr.rel target = $region3
    $region8: #{dvl_encoder.1} parent=1 // loop_exit
      _
    %577 = vsyncpa [#allocation7], 1
    %s578 = scalar_lea.sflag [#allocation7], 1
    %579 = vsyncpa %s578, 1
    %580 = vsyncpa [#allocation10], 1
    %581 = vsyncpa [#allocation8], 1
    %s582 = scalar_lea.sflag [#allocation8], 1
    %583 = vsyncpa %s582, 1

</llo_original>
